<compile_context>
chip_gen: v6e
topology: v6e:2x2x1
jax: 0.10.0
libtpu: 0.0.40
codegen_flags: <defaults>
</compile_context>

<pallas_src>
import functools

import jax
import jax.numpy as jnp
from jax.experimental import pallas as pl
from jax.experimental.pallas import tpu as pltpu


# ----------------------------------------------------------------------------
# Kernels
# ----------------------------------------------------------------------------
def _concat_lanes_kernel(offsets, widths, *refs):
    """Canonical 2D layout (row_tile, W): concat along the lane axis.

    refs = (in_0, ..., in_{n-1}, out).  offsets/widths are static Python ints
    (elements of the flattened lane axis), so every pl.ds is compile-time
    known.
    """
    out_ref = refs[-1]
    for in_ref, off, w in zip(refs[:-1], offsets, widths):
        out_ref[:, pl.ds(off, w)] = in_ref[...]


def _concat_dma_kernel(copy_plan, n_in, *refs):
    """Pure data movement: one strided HBM->HBM DMA per planned chunk.

    refs = (in_0, ..., in_{n-1}, out, dma_sems).  No VMEM round trip: the DMA
    engine writes each input chunk directly into its slice of the output
    slab.  copy_plan entries are static
    (input_idx, row0, nrows, out_col0, in_col0, ncols) tuples; all chunks are
    started before any wait so they are in flight concurrently.
    """
    in_refs = refs[:n_in]
    out_ref = refs[n_in]
    sems = refs[n_in + 1]
    copies = []
    for k, (i, r0, nr, co, ci, nc) in enumerate(copy_plan):
        cp = pltpu.make_async_copy(
            in_refs[i].at[pl.ds(r0, nr), pl.ds(ci, nc)],
            out_ref.at[pl.ds(r0, nr), pl.ds(co, nc)],
            sems.at[k],
        )
        cp.start()
        copies.append(cp)
    for cp in copies:
        cp.wait()


# ----------------------------------------------------------------------------
# Sizing helpers
# ----------------------------------------------------------------------------
_DEFAULT_MIN_PALLAS_BYTES = 2 << 20   # below this, XLA's fused concat wins
_TARGET_GRID_STEPS = 8                # keep pipelining / both v7x TCs busy
_SMALL_PROBLEM_BYTES = 4 << 20        # below this, fewest grid steps wins
_DMA_CHUNK_BYTES = 8 << 20            # split very large per-input DMA copies


@functools.lru_cache(maxsize=None)
def _vmem_budget():
    """Chip-aware budgets derived from physical VMEM (v5e/v6e 128 MiB, v7x 64 MiB)."""
    phys = 64 << 20                               # conservative default (v7x)
    try:
        phys = int(pltpu.get_tpu_info().vmem_capacity_bytes)
    except Exception:
        pass
    block_budget = phys // 3                      # double-buffered working set
    vmem_limit = min(phys * 3 // 4, 112 << 20)    # explicit scoped-VMEM request
    return block_budget, vmem_limit


def _sublane_rows(itemsize):
    # Rows per fully-populated sublane tile: 8 f32, 16 bf16/f16, 32 int8/fp8.
    return max(8, 32 // max(1, int(itemsize)))


def _choose_row_tile(lead, W, itemsize, block_budget, sub_rows, block_rows):
    """Row tile for the VMEM-staged path.  Returns 0 if it cannot fit."""
    if block_rows is not None:                    # test hook (forces raggedness)
        tl = max(1, min(int(block_rows), lead))
        if tl < lead and tl % sub_rows:
            tl = max(sub_rows, (tl // sub_rows) * sub_rows)
        return min(tl, lead)

    per_row = 4 * W * itemsize                    # 2x-buffered inputs + output
    budget_rows = block_budget // per_row
    if lead <= sub_rows:
        return lead if budget_rows >= lead else 0
    if budget_rows < sub_rows:
        return 0
    max_rows = (budget_rows // sub_rows) * sub_rows
    if lead * W * itemsize <= _SMALL_PROBLEM_BYTES:
        want = lead                               # fewest 0.35us grid steps
    else:
        want = -(-lead // _TARGET_GRID_STEPS)     # ~8 steps on big inputs
    want = -(-want // sub_rows) * sub_rows        # sublane-aligned
    return min(want, max_rows, lead)


def _dma_plan(lead, widths, offsets, itemsize):
    """Static per-input copy chunks for the direct-DMA path."""
    plan = []
    for i, (w, off) in enumerate(zip(widths, offsets)):
        nbytes = lead * w * itemsize
        nchunks = int(max(1, min(8, nbytes // _DMA_CHUNK_BYTES)))
        if lead > 1:
            nchunks = min(nchunks, lead)
            rows = -(-lead // nchunks)
            r0 = 0
            while r0 < lead:
                nr = min(rows, lead - r0)
                plan.append((i, r0, nr, off, 0, w))
                r0 += nr
        else:
            # lead == 1: each region is fully contiguous; chunk along lanes.
            nchunks = min(nchunks, w)
            cols = -(-w // nchunks)
            c0 = 0
            while c0 < w:
                nc = min(cols, w - c0)
                plan.append((i, 0, 1, off + c0, c0, nc))
                c0 += nc
    return tuple(plan)


# ----------------------------------------------------------------------------
# Wrapper
# ----------------------------------------------------------------------------
def concat(seq, dim=0, *, min_pallas_bytes=_DEFAULT_MIN_PALLAS_BYTES,
           block_rows=None):
    seq = tuple(seq)
    assert len(seq) >= 1
    if len(seq) == 1:
        return seq[0]

    ndim = seq[0].ndim
    dim = dim % ndim
    dtype = seq[0].dtype
    for x in seq:
        assert x.ndim == ndim and x.dtype == dtype, "rank/dtype must match"
        for ax in range(ndim):
            if ax != dim:
                assert x.shape[ax] == seq[0].shape[ax], "non-concat dims must match"

    seq_nz = tuple(x for x in seq if x.shape[dim] > 0)
    if not seq_nz:
        return jnp.concatenate(seq, axis=dim)
    if len(seq_nz) == 1:
        return seq_nz[0]

    lead = 1
    for s in seq[0].shape[:dim]:
        lead *= int(s)
    rest = 1
    for s in seq[0].shape[dim + 1:]:
        rest *= int(s)

    sizes = tuple(int(x.shape[dim]) for x in seq_nz)
    total = int(sum(sizes))
    itemsize = int(jnp.dtype(dtype).itemsize)

    out_shape = list(seq[0].shape)
    out_shape[dim] = total
    out_shape = tuple(out_shape)

    # The concat axis and everything after it are contiguous per input, so the
    # whole problem is a lane-axis concat of (lead, s_i*rest) slabs.  Pure
    # reshapes; no transpose/moveaxis glue.
    widths = tuple(s * rest for s in sizes)
    offsets = tuple(int(sum(widths[:i])) for i in range(len(widths)))
    W = total * rest
    out_bytes = lead * W * itemsize

    if lead == 0 or W == 0 or out_bytes < min_pallas_bytes:
        # Tiny/degenerate: let XLA fuse the concat into producers/consumers.
        return jnp.concatenate(seq_nz, axis=dim)

    canon = [x.reshape(lead, w) for x, w in zip(seq_nz, widths)]
    n = len(canon)

    block_budget, vmem_limit = _vmem_budget()
    sub_rows = _sublane_rows(itemsize)
    tl = _choose_row_tile(lead, W, itemsize, block_budget, sub_rows, block_rows)

    if tl > 0:
        # ---- VMEM-staged, BlockSpec-pipelined, lane-dense copy --------------
        grid = (pl.cdiv(lead, tl),)
        kernel = functools.partial(_concat_lanes_kernel, offsets, widths)
        out2d = pl.pallas_call(
            kernel,
            out_shape=jax.ShapeDtypeStruct((lead, W), dtype),
            grid=grid,
            in_specs=[pl.BlockSpec((tl, w), lambda l: (l, 0)) for w in widths],
            out_specs=pl.BlockSpec((tl, W), lambda l: (l, 0)),
            compiler_params=pltpu.CompilerParams(
                dimension_semantics=("parallel",),
                vmem_limit_bytes=vmem_limit),
        )(*canon)
        return out2d.reshape(out_shape)

    # ---- Direct HBM->HBM DMA path (no VMEM staging) -------------------------
    # Used when even a single sublane-aligned row tile would blow the VMEM
    # budget: dim==0 (lead==1) with large inputs, or extremely wide rows.
    plan = _dma_plan(lead, widths, offsets, itemsize)
    kernel = functools.partial(_concat_dma_kernel, plan, n)
    out2d = pl.pallas_call(
        kernel,
        out_shape=jax.ShapeDtypeStruct((lead, W), dtype),
        in_specs=[pl.BlockSpec(memory_space=pl.ANY)] * n,
        out_specs=pl.BlockSpec(memory_space=pl.ANY),
        scratch_shapes=[pltpu.SemaphoreType.DMA((len(plan),))],
    )(*canon)
    return out2d.reshape(out_shape)


class Concat:
    """JAX/Pallas equivalent of the PyTorch Concat module."""

    def __init__(self, dim=0):
        self.dim = dim

    def __call__(self, *seq):
        return concat(seq, dim=self.dim)


if __name__ == "__main__":
    key = jax.random.PRNGKey(0)
    keys = jax.random.split(key, 10)

    x1 = jax.random.normal(keys[0], (2, 4, 16, 16), dtype=jnp.float32)
    x2 = jax.random.normal(keys[1], (2, 4, 16, 16), dtype=jnp.float32)
    x3 = jax.random.normal(keys[2], (2, 8, 16, 16), dtype=jnp.float32)
    x4 = jax.random.normal(keys[3], (2, 4, 16, 32), dtype=jnp.float32)

    # --- Pallas kernel forced on (min_pallas_bytes=0) ---
    # dim=0 (module default, batch concat).
    y0 = jax.block_until_ready(concat((x1, x2), dim=0, min_pallas_bytes=0))
    assert y0.shape == (4, 4, 16, 16)
    assert jnp.array_equal(y0, jnp.concatenate([x1, x2], axis=0))

    # dim=1 channel concat (rest=256 -> 128-aligned lane offsets).
    y1 = jax.block_until_ready(concat((x1, x2, x3), dim=1, min_pallas_bytes=0))
    assert y1.shape == (2, 16, 16, 16)
    assert jnp.array_equal(y1, jnp.concatenate([x1, x2, x3], axis=1))

    # dim=-1 (last axis): narrow, unaligned lane offsets (masked stores).
    y2 = jax.block_until_ready(concat((x1, x4), dim=3, min_pallas_bytes=0))
    assert y2.shape == (2, 4, 16, 48)
    assert jnp.array_equal(y2, jnp.concatenate([x1, x4], axis=3))

    # dim=2 middle-axis concat with non-multiple-of-8 extents.
    x5 = jax.random.normal(keys[4], (2, 4, 10, 16), dtype=jnp.float32)
    x6 = jax.random.normal(keys[5], (2, 4, 6, 16), dtype=jnp.float32)
    y3 = jax.block_until_ready(concat((x5, x6), dim=2, min_pallas_bytes=0))
    assert y3.shape == (2, 4, 16, 16)
    assert jnp.array_equal(y3, jnp.concatenate([x5, x6], axis=2))

    # Ragged final row block (lead=24, forced 16-row tiles -> masked edge).
    a1 = jax.random.normal(keys[6], (24, 3, 8, 16), dtype=jnp.float32)
    a2 = jax.random.normal(keys[7], (24, 5, 8, 16), dtype=jnp.float32)
    y4 = jax.block_until_ready(
        concat((a1, a2), dim=1, min_pallas_bytes=0, block_rows=16))
    assert y4.shape == (24, 8, 8, 16)
    assert jnp.array_equal(y4, jnp.concatenate([a1, a2], axis=1))

    # --- Module API with default threshold ---
    # Small concat -> jnp.concatenate fallback (XLA-fusable path).
    cat0 = Concat(dim=0)
    y_small = jax.block_until_ready(cat0(x1, x2))
    assert jnp.array_equal(y_small, jnp.concatenate([x1, x2], axis=0))

    # Moderately sized channel concat -> tiled Pallas kernel.
    a = jax.random.normal(keys[8], (4, 64, 32, 32), dtype=jnp.float32)
    b = jax.random.normal(keys[9], (4, 96, 32, 32), dtype=jnp.float32)
    cat1 = Concat(dim=1)
    yb = jax.block_until_ready(cat1(a, b))
    assert yb.shape == (4, 160, 32, 32)
    assert jnp.array_equal(yb, jnp.concatenate([a, b], axis=1))

    print("KERNEL_OK")
</pallas_src>

<mosaic_0001>
module attributes {stable_mosaic.version = 11 : i64} {
  func.func @_concat_lanes_kernel(%arg0: i32, %arg1: memref<1x2048xf32, #tpu.memory_space<vmem>>, %arg2: memref<1x2048xf32, #tpu.memory_space<vmem>>, %arg3: memref<1x4096xf32, #tpu.memory_space<vmem>>) attributes {dimension_semantics = [#tpu.dimension_semantics<parallel>], iteration_bounds = array<i64: 1>, scalar_prefetch = 0 : i64, scratch_operands = 0 : i64, tpu.core_type = #tpu.core_type<tc>, window_params = [{transform_indices = @transform_0, window_bounds = array<i64: 1, 2048>}, {transform_indices = @transform_1, window_bounds = array<i64: 1, 2048>}, {transform_indices = @transform_2, window_bounds = array<i64: 1, 4096>}]} {
    %c0 = arith.constant 0 : index
    %c0_0 = arith.constant 0 : index
    %0 = vector.load %arg1[%c0, %c0_0] : memref<1x2048xf32, #tpu.memory_space<vmem>>, vector<1x2048xf32>
    %c0_1 = arith.constant 0 : index
    %c0_2 = arith.constant 0 : index
    %1 = vector.load %arg3[%c0_1, %c0_2] : memref<1x4096xf32, #tpu.memory_space<vmem>>, vector<1x2048xf32>
    tpu.vector_store %arg3[%c0_1, %c0_2], %0 {strides = array<i32>} : memref<1x4096xf32, #tpu.memory_space<vmem>>, vector<1x2048xf32>,
    %c0_3 = arith.constant 0 : index
    %c0_4 = arith.constant 0 : index
    %2 = vector.load %arg2[%c0_3, %c0_4] : memref<1x2048xf32, #tpu.memory_space<vmem>>, vector<1x2048xf32>
    %c0_5 = arith.constant 0 : index
    %c2048 = arith.constant 2048 : index
    %3 = vector.load %arg3[%c0_5, %c2048] : memref<1x4096xf32, #tpu.memory_space<vmem>>, vector<1x2048xf32>
    tpu.vector_store %arg3[%c0_5, %c2048], %2 {strides = array<i32>} : memref<1x4096xf32, #tpu.memory_space<vmem>>, vector<1x2048xf32>,
    return
  }
  func.func @transform_0(%arg0: i32) -> (i32, i32) {
    %c0_i32 = arith.constant 0 : i32
    %c0_i32_0 = arith.constant 0 : i32
    return %arg0, %c0_i32 : i32, i32
  }
  func.func @transform_1(%arg0: i32) -> (i32, i32) {
    %c0_i32 = arith.constant 0 : i32
    %c0_i32_0 = arith.constant 0 : i32
    return %arg0, %c0_i32 : i32, i32
  }
  func.func @transform_2(%arg0: i32) -> (i32, i32) {
    %c0_i32 = arith.constant 0 : i32
    %c0_i32_0 = arith.constant 0 : i32
    return %arg0, %c0_i32 : i32, i32
  }
}

</mosaic_0001>

<llo_original>
// kernel: tpu_custom_call.1
$region0: #{tpu_custom_call.1}
  #allocation0 [shape = 'u32[]', space=smem, size = 0x4, offset = 0x4, fixed_abs, tag = 'smem constant byte address 0x4 - core index']
  #allocation1 [shape = 'u32[144,128]{1,0:T(1,128)}', space=vmem, size = 0x12000, scoped, tag = 'internal scratch']
  %s0 = inlined_call_operand.hbm [shape: f32[1,2048], index: 0, kind: input, shape index: {}]
  %s1 = inlined_call_operand.hbm [shape: f32[1,2048], index: 1, kind: input, shape index: {}]
  %s2 = inlined_call_operand.hbm [shape: f32[1,4096], index: 2, kind: output, shape index: {}]
  %s3 = sld [smem:[#allocation0]]
  $region26: #{tpu_custom_call.1} parent=0
    _
  %s5 = ssub.s32 1, %s3
  %s6 = scalar_select 0, %s5, %s3
  $region1: #{tpu_custom_call.1} parent=0
    #allocation2 [shape = 'u8[8192]{0}', space=vmem, size = 0x2000, scoped, tag = 'input window, operand 0, single buffered']
    #allocation3 [shape = 's32[1]{0}', space=sflag, size = 0x4, scoped, tag = 'scoped memory for tpu_custom_call.1']
    #allocation4 [shape = 's32[1]{0}', space=sflag, size = 0x4, scoped, tag = 'scoped memory for tpu_custom_call.1']
    #allocation5 [shape = 'u8[8192]{0}', space=vmem, size = 0x2000, scoped, tag = 'input window, operand 1, single buffered']
    #allocation6 [shape = 's32[1]{0}', space=sflag, size = 0x4, scoped, tag = 'scoped memory for tpu_custom_call.1']
    #allocation7 [shape = 'u8[16384]{0}', space=vmem, size = 0x4000, scoped, tag = 'output window, operand 0, single buffered']
    %7 = vsyncpa [#allocation3], 0
    %8 = vsyncpa [#allocation6], 0
    %9 = vsyncpa [#allocation4], 0
    // Predicated region
    $region2: #{tpu_custom_call.1} parent=1 // pred_check
      _
    $region3: #{tpu_custom_call.1} parent=1 // pred_check_branch
      %11 = sbr.rel (0) target = $region5
    $region4: #{tpu_custom_call.1} parent=1 // pred_region
      %s13 = ssub.s32 256, 256
      %14 = vsyncadd [#allocation3], %s13
      %s16 = sshll.u32 [#allocation2], 4
      %s17 = int_to_ptr.vmem [resolvable:$true] %s16
      %19 = dma.hbm_to_vmem [thread:$0]  %s0, 256, %s17, [#allocation3]
    $region5: #{tpu_custom_call.1} parent=1 // pred_fallthru
      _
    // Predicated region
    $region6: #{tpu_custom_call.1} parent=1 // pred_check
      _
    $region7: #{tpu_custom_call.1} parent=1 // pred_check_branch
      %21 = sbr.rel (0) target = $region9
    $region8: #{tpu_custom_call.1} parent=1 // pred_region
      %s23 = ssub.s32 256, 256
      %24 = vsyncadd [#allocation6], %s23
      %s26 = sshll.u32 [#allocation5], 4
      %s27 = int_to_ptr.vmem [resolvable:$true] %s26
      %29 = dma.hbm_to_vmem [thread:$0]  %s1, 256, %s27, [#allocation6]
    $region9: #{tpu_custom_call.1} parent=1 // pred_fallthru
      _
    // Predicated region
    $region10: #{tpu_custom_call.1} parent=1 // pred_check
      _
    $region11: #{tpu_custom_call.1} parent=1 // pred_check_branch
      %31 = sbr.rel (0) target = $region13
    $region12: #{tpu_custom_call.1} parent=1 // pred_region
      %32 = dma.done [#allocation3], 256
    $region13: #{tpu_custom_call.1} parent=1 // pred_fallthru
      _
    // Predicated region
    $region14: #{tpu_custom_call.1} parent=1 // pred_check
      _
    $region15: #{tpu_custom_call.1} parent=1 // pred_check_branch
      %34 = sbr.rel (0) target = $region17
    $region16: #{tpu_custom_call.1} parent=1 // pred_region
      %35 = dma.done [#allocation6], 256
    $region17: #{tpu_custom_call.1} parent=1 // pred_fallthru
      _
    %v36 = vld [vmem:[#allocation2] sm:$0xff]
    %v37 = vld [vmem:[#allocation2 + $0x8] sm:$0xff]
    %38 = vst [vmem:[#allocation7] sm:$0xff] %v36
    %39 = vst [vmem:[#allocation7 + $0x8] sm:$0xff] %v37
    %v40 = vld [vmem:[#allocation5] sm:$0xff]
    %v41 = vld [vmem:[#allocation5 + $0x8] sm:$0xff]
    %42 = vst [vmem:[#allocation7 + $0x10] sm:$0xff] %v40
    %43 = vst [vmem:[#allocation7 + $0x18] sm:$0xff] %v41
    // Predicated region
    $region18: #{tpu_custom_call.1} parent=1 // pred_check
      _
    $region19: #{tpu_custom_call.1} parent=1 // pred_check_branch
      %45 = sbr.rel (0) target = $region21
    $region20: #{tpu_custom_call.1} parent=1 // pred_region
      %s47 = ssub.s32 512, 512
      %48 = vsyncadd [#allocation4], %s47
      %s50 = sshll.u32 [#allocation7], 4
      %s51 = int_to_ptr.vmem [resolvable:$true] %s50
      %53 = dma.vmem_to_hbm [thread:$0]  %s51, 512, %s2, [#allocation4]
    $region21: #{tpu_custom_call.1} parent=1 // pred_fallthru
      _
    // Predicated region
    $region22: #{tpu_custom_call.1} parent=1 // pred_check
      _
    $region23: #{tpu_custom_call.1} parent=1 // pred_check_branch
      %55 = sbr.rel (0) target = $region25
    $region24: #{tpu_custom_call.1} parent=1 // pred_region
      %56 = dma.done [#allocation4], 512
    $region25: #{tpu_custom_call.1} parent=1 // pred_fallthru
      _
    %57 = vsyncpa [#allocation3], 1
    %58 = vsyncpa [#allocation6], 1
    %59 = vsyncpa [#allocation4], 1

</llo_original>
